<compile_context>
chip_gen: v6e
topology: v6e:2x2x1
jax: 0.10.0
libtpu: 0.0.40
codegen_flags: <defaults>
</compile_context>

<pallas_src>
import functools

import jax
import jax.numpy as jnp
from jax.experimental import pallas as pl
from jax.experimental.pallas import tpu as pltpu

EPS = 1e-5  # nn.LayerNorm default


# ----------------------------------------------------------------------------
# in-kernel helpers
# ----------------------------------------------------------------------------
def _layernorm(x, w, b):
    # x: (N, D) f32, w/b: (1, D) f32 (biased variance, matches nn.LayerNorm)
    mu = jnp.mean(x, axis=-1, keepdims=True)
    var = jnp.mean((x - mu) ** 2, axis=-1, keepdims=True)
    return (x - mu) * jax.lax.rsqrt(var + EPS) * w + b


# ----------------------------------------------------------------------------
# kernels
# ----------------------------------------------------------------------------
def embed_kernel(patches_ref, w_ref, b_ref, cls_ref, pos_ref, out_ref):
    # patches_ref: (1, Np, C*p*p) bf16, w_ref: (C*p*p, D) bf16, b_ref: (1, D)
    # cls_ref: (1, D) f32, pos_ref: (1, Np+1, D) f32
    emb = jnp.dot(patches_ref[0], w_ref[...],
                  preferred_element_type=jnp.float32) + b_ref[...]     # (Np, D)
    tok = jnp.concatenate([cls_ref[...], emb], axis=0) + pos_ref[0]    # (N, D)
    out_ref[...] = tok[None].astype(out_ref.dtype)


def blocks_kernel(x_ref, ln1w_ref, ln1b_ref, wq_ref, wk_ref, wv_ref,
                  projw_ref, projb_ref, ln2w_ref, ln2b_ref,
                  fc1w_ref, fc1b_ref, fc2w_ref, fc2b_ref,
                  out_ref, *, num_heads):
    # grid = (batch, depth); the token block for this batch element is carried
    # in out_ref across the depth axis.
    layer = pl.program_id(1)

    @pl.when(layer == 0)
    def _():
        out_ref[...] = x_ref[...]

    x = out_ref[0]                                  # (N, D) f32
    n, d = x.shape
    dh = d // num_heads
    scale = dh ** (-0.5)

    # ---- attention branch (pre-norm) ----------------------------------
    xn = _layernorm(x, ln1w_ref[0], ln1b_ref[0]).astype(jnp.bfloat16)
    q = jnp.dot(xn, wq_ref[0], preferred_element_type=jnp.float32)     # (N, D)
    k = jnp.dot(xn, wk_ref[0], preferred_element_type=jnp.float32)
    v = jnp.dot(xn, wv_ref[0], preferred_element_type=jnp.float32)

    qh = q.reshape(n, num_heads, dh).astype(jnp.bfloat16)              # (N, H, dh)
    kh = k.reshape(n, num_heads, dh).astype(jnp.bfloat16)
    vh = v.reshape(n, num_heads, dh).astype(jnp.bfloat16)

    # head-batched score matmul: (H, N, N)
    scores = jnp.einsum('nhd,mhd->hnm', qh, kh,
                        preferred_element_type=jnp.float32) * scale
    m = jnp.max(scores, axis=-1, keepdims=True)
    e = jnp.exp(scores - m)
    s = jnp.sum(e, axis=-1, keepdims=True)
    attn = e * pl.reciprocal(s, approx=True)                           # softmax
    # head-batched context matmul: (N, H, dh) -> flatten heads -> (N, D)
    ctx = jnp.einsum('hnm,mhd->nhd', attn.astype(jnp.bfloat16), vh,
                     preferred_element_type=jnp.float32).reshape(n, d)
    attn_out = jnp.dot(ctx.astype(jnp.bfloat16), projw_ref[0],
                       preferred_element_type=jnp.float32) + projb_ref[0]
    x = x + attn_out

    # ---- MLP branch (pre-norm) -----------------------------------------
    xn2 = _layernorm(x, ln2w_ref[0], ln2b_ref[0]).astype(jnp.bfloat16)
    h = jnp.dot(xn2, fc1w_ref[0],
                preferred_element_type=jnp.float32) + fc1b_ref[0]
    h = jax.nn.gelu(h, approximate=False)            # exact erf GELU == nn.GELU()
    x = x + jnp.dot(h.astype(jnp.bfloat16), fc2w_ref[0],
                    preferred_element_type=jnp.float32) + fc2b_ref[0]

    out_ref[...] = x[None].astype(out_ref.dtype)


def head_kernel(cls_ref, lnw_ref, lnb_ref, hw_ref, hb_ref, out_ref):
    # cls_ref: (B, D) f32 (cls rows only), hw_ref: (D, C) bf16
    xn = _layernorm(cls_ref[...], lnw_ref[...], lnb_ref[...])
    out_ref[...] = jnp.dot(xn.astype(jnp.bfloat16), hw_ref[...],
                           preferred_element_type=jnp.float32) + hb_ref[...]


# ----------------------------------------------------------------------------
# pallas_call wrappers
# ----------------------------------------------------------------------------
def embed_call(patches, w, b, cls_tok, pos):
    B, Np, F = patches.shape
    D = w.shape[1]
    N = Np + 1
    return pl.pallas_call(
        embed_kernel,
        out_shape=jax.ShapeDtypeStruct((B, N, D), jnp.float32),
        grid=(B,),
        in_specs=[pl.BlockSpec((1, Np, F), lambda i: (i, 0, 0)),
                  pl.BlockSpec((F, D), lambda i: (0, 0)),
                  pl.BlockSpec((1, D), lambda i: (0, 0)),
                  pl.BlockSpec((1, D), lambda i: (0, 0)),
                  pl.BlockSpec((1, N, D), lambda i: (0, 0, 0))],
        out_specs=pl.BlockSpec((1, N, D), lambda i: (i, 0, 0)),
        compiler_params=pltpu.CompilerParams(dimension_semantics=("parallel",)),
    )(patches, w, b, cls_tok, pos)


def blocks_call(x, blocks, *, num_heads):
    B, N, D = x.shape
    depth = blocks["wq"].shape[0]

    names = ["ln1_w", "ln1_b", "wq", "wk", "wv", "proj_w", "proj_b",
             "ln2_w", "ln2_b", "fc1_w", "fc1_b", "fc2_w", "fc2_b"]
    wargs = [blocks[n] for n in names]          # all stacked (depth, X, Y)

    def layer_spec(a):
        return pl.BlockSpec((1, a.shape[1], a.shape[2]),
                            lambda b, l: (l, 0, 0))

    in_specs = ([pl.BlockSpec((1, N, D), lambda b, l: (b, 0, 0))]
                + [layer_spec(a) for a in wargs])
    return pl.pallas_call(
        functools.partial(blocks_kernel, num_heads=num_heads),
        out_shape=jax.ShapeDtypeStruct((B, N, D), jnp.float32),
        grid=(B, depth),
        in_specs=in_specs,
        out_specs=pl.BlockSpec((1, N, D), lambda b, l: (b, 0, 0)),
        compiler_params=pltpu.CompilerParams(
            dimension_semantics=("parallel", "arbitrary"),
            vmem_limit_bytes=48 * 1024 * 1024),
    )(x, *wargs)


def head_call(cls_tokens, lnw, lnb, hw, hb):
    B, D = cls_tokens.shape
    C = hw.shape[1]
    return pl.pallas_call(
        head_kernel,
        out_shape=jax.ShapeDtypeStruct((B, C), jnp.float32),
        grid=(1,),
        in_specs=[pl.BlockSpec((B, D), lambda i: (0, 0)),
                  pl.BlockSpec((1, D), lambda i: (0, 0)),
                  pl.BlockSpec((1, D), lambda i: (0, 0)),
                  pl.BlockSpec((D, C), lambda i: (0, 0)),
                  pl.BlockSpec((1, C), lambda i: (0, 0))],
        out_specs=pl.BlockSpec((B, C), lambda i: (0, 0)),
    )(cls_tokens, lnw, lnb, hw, hb)


# ----------------------------------------------------------------------------
# model: parameter init + forward
# ----------------------------------------------------------------------------
def _trunc_normal(key, shape, std=0.02):
    return (std * jax.random.truncated_normal(key, -2.0, 2.0, shape)).astype(jnp.float32)


def init_params(key, *, img_size, patch, in_chans, embed_dim, depth,
                mlp_ratio, num_classes):
    D = embed_dim
    num_patches = (img_size // patch) ** 2
    N = num_patches + 1
    hidden = int(embed_dim * mlp_ratio)

    k_conv, k_cls, k_pos, k_head, k_blocks = jax.random.split(key, 5)

    conv_w = _trunc_normal(k_conv, (D, in_chans, patch, patch))
    params = {
        # Conv2d(kernel=stride=patch) as a matmul: (C*p*p, D), bf16, pre-done.
        "patch_w": conv_w.reshape(D, -1).T.astype(jnp.bfloat16),
        "patch_b": jnp.zeros((1, D), jnp.float32),
        "cls": _trunc_normal(k_cls, (1, D)),
        "pos": _trunc_normal(k_pos, (1, N, D)),
        "norm_w": jnp.ones((1, D), jnp.float32),
        "norm_b": jnp.zeros((1, D), jnp.float32),
        "head_w": _trunc_normal(k_head, (num_classes, D)).T.astype(jnp.bfloat16),
        "head_b": jnp.zeros((1, num_classes), jnp.float32),
    }

    wq, wk, wv, pw, f1, f2 = [], [], [], [], [], []
    for l in range(depth):
        kq, kk, kv, kp, k1, k2 = jax.random.split(jax.random.fold_in(k_blocks, l), 6)
        # torch Linear weight is (out, in); pre-transpose once to (in, out).
        wq.append(_trunc_normal(kq, (D, D)).T)       # q part of qkv (qkv_bias=False)
        wk.append(_trunc_normal(kk, (D, D)).T)
        wv.append(_trunc_normal(kv, (D, D)).T)
        pw.append(_trunc_normal(kp, (D, D)).T)
        f1.append(_trunc_normal(k1, (hidden, D)).T)
        f2.append(_trunc_normal(k2, (D, hidden)).T)

    params["blocks"] = {
        # vector params kept (depth, 1, X) so every block's last two dims
        # match the full array dims (lane/sublane friendly BlockSpecs).
        "ln1_w": jnp.ones((depth, 1, D), jnp.float32),
        "ln1_b": jnp.zeros((depth, 1, D), jnp.float32),
        "wq": jnp.stack(wq).astype(jnp.bfloat16),
        "wk": jnp.stack(wk).astype(jnp.bfloat16),
        "wv": jnp.stack(wv).astype(jnp.bfloat16),
        "proj_w": jnp.stack(pw).astype(jnp.bfloat16),
        "proj_b": jnp.zeros((depth, 1, D), jnp.float32),
        "ln2_w": jnp.ones((depth, 1, D), jnp.float32),
        "ln2_b": jnp.zeros((depth, 1, D), jnp.float32),
        "fc1_w": jnp.stack(f1).astype(jnp.bfloat16),
        "fc1_b": jnp.zeros((depth, 1, hidden), jnp.float32),
        "fc2_w": jnp.stack(f2).astype(jnp.bfloat16),
        "fc2_b": jnp.zeros((depth, 1, D), jnp.float32),
    }
    return params


def vit_forward(x, params, *, patch, num_heads):
    B, C, H, W = x.shape
    p = patch
    Hp, Wp = H // p, W // p

    # Patch extraction (conv k=stride=p as matmul); feature order (c, ph, pw)
    # matches conv-weight flatten order.  bf16 for the MXU.
    patches = (x.reshape(B, C, Hp, p, Wp, p)
                 .transpose(0, 2, 4, 1, 3, 5)
                 .reshape(B, Hp * Wp, C * p * p)).astype(jnp.bfloat16)

    # patch-embed + cls concat + pos-embed (pos_drop is identity, p=0)
    tokens = embed_call(patches, params["patch_w"], params["patch_b"],
                        params["cls"], params["pos"])          # (B, N, D)

    # all transformer blocks in one pipelined pallas_call
    tokens = blocks_call(tokens, params["blocks"], num_heads=num_heads)

    # final LayerNorm on cls token + head (global_pooling=False, dino=False)
    cls_rows = tokens[:, 0, :]                                  # (B, D) glue slice
    logits = head_call(cls_rows, params["norm_w"], params["norm_b"],
                       params["head_w"], params["head_b"])
    return logits


if __name__ == "__main__":
    BATCH = 2
    IMG = 16
    PATCH = 4
    CHANS = 3
    DIM = 128        # lane-dense embedding dim
    DEPTH = 2
    HEADS = 4
    MLP_RATIO = 4.0
    CLASSES = 16

    root = jax.random.PRNGKey(0)
    k_param, k_x = jax.random.split(root)

    params = init_params(k_param, img_size=IMG, patch=PATCH, in_chans=CHANS,
                         embed_dim=DIM, depth=DEPTH, mlp_ratio=MLP_RATIO,
                         num_classes=CLASSES)
    x = jax.random.normal(k_x, (BATCH, CHANS, IMG, IMG), dtype=jnp.float32)

    logits = vit_forward(x, params, patch=PATCH, num_heads=HEADS)
    logits = jax.block_until_ready(logits)

    assert logits.shape == (BATCH, CLASSES), logits.shape
    assert bool(jnp.all(jnp.isfinite(logits)))
    print("KERNEL_OK")
</pallas_src>

<mosaic_0001>
module attributes {stable_mosaic.version = 11 : i64} {
  func.func @embed_kernel(%arg0: i32, %arg1: memref<1x16x48xbf16, #tpu.memory_space<vmem>>, %arg2: memref<48x128xbf16, #tpu.memory_space<vmem>>, %arg3: memref<1x128xf32, #tpu.memory_space<vmem>>, %arg4: memref<1x128xf32, #tpu.memory_space<vmem>>, %arg5: memref<1x17x128xf32, #tpu.memory_space<vmem>>, %arg6: memref<1x17x128xf32, #tpu.memory_space<vmem>>) attributes {dimension_semantics = [#tpu.dimension_semantics<parallel>], iteration_bounds = array<i64: 2>, scalar_prefetch = 0 : i64, scratch_operands = 0 : i64, tpu.core_type = #tpu.core_type<tc>, window_params = [{transform_indices = @transform_0, window_bounds = array<i64: 1, 16, 48>}, {pipeline_mode = #tpu.pipeline_mode<synchronous>, transform_indices = @transform_1, window_bounds = array<i64: 48, 128>}, {pipeline_mode = #tpu.pipeline_mode<synchronous>, transform_indices = @transform_2, window_bounds = array<i64: 1, 128>}, {pipeline_mode = #tpu.pipeline_mode<synchronous>, transform_indices = @transform_3, window_bounds = array<i64: 1, 128>}, {pipeline_mode = #tpu.pipeline_mode<synchronous>, transform_indices = @transform_4, window_bounds = array<i64: 1, 17, 128>}, {transform_indices = @transform_5, window_bounds = array<i64: 1, 17, 128>}]} {
    %c0 = arith.constant 0 : index
    %c0_0 = arith.constant 0 : index
    %c0_1 = arith.constant 0 : index
    %0 = vector.load %arg1[%c0, %c0_0, %c0_1] : memref<1x16x48xbf16, #tpu.memory_space<vmem>>, vector<1x16x48xbf16>
    %1 = vector.shape_cast %0 : vector<1x16x48xbf16> to vector<16x48xbf16>
    %c0_2 = arith.constant 0 : index
    %c0_3 = arith.constant 0 : index
    %2 = vector.load %arg2[%c0_2, %c0_3] : memref<48x128xbf16, #tpu.memory_space<vmem>>, vector<48x128xbf16>
    %cst = arith.constant dense<0.000000e+00> : vector<16x128xf32>
    %3 = tpu.matmul %1, %2, %cst {dimension_numbers = #tpu.dot_dimension_numbers<[1], [0], [0], [1], [0, 0, 1, 1], [], []>} : vector<16x48xbf16>, vector<48x128xbf16>, vector<16x128xf32> -> vector<16x128xf32>
    %c0_4 = arith.constant 0 : index
    %c0_5 = arith.constant 0 : index
    %4 = vector.load %arg3[%c0_4, %c0_5] : memref<1x128xf32, #tpu.memory_space<vmem>>, vector<1x128xf32>
    %5 = vector.broadcast %4 : vector<1x128xf32> to vector<16x128xf32>
    %6 = arith.addf %3, %5 : vector<16x128xf32>
    %c0_6 = arith.constant 0 : index
    %c0_7 = arith.constant 0 : index
    %7 = vector.load %arg4[%c0_6, %c0_7] : memref<1x128xf32, #tpu.memory_space<vmem>>, vector<1x128xf32>
    %8 = tpu.concatenate %7, %6 in 0 : vector<1x128xf32>, vector<16x128xf32> -> vector<17x128xf32>
    %c0_8 = arith.constant 0 : index
    %c0_9 = arith.constant 0 : index
    %c0_10 = arith.constant 0 : index
    %9 = vector.load %arg5[%c0_8, %c0_9, %c0_10] : memref<1x17x128xf32, #tpu.memory_space<vmem>>, vector<1x17x128xf32>
    %10 = vector.shape_cast %9 : vector<1x17x128xf32> to vector<17x128xf32>
    %11 = arith.addf %8, %10 : vector<17x128xf32>
    %12 = vector.shape_cast %11 : vector<17x128xf32> to vector<1x17x128xf32>
    %c0_11 = arith.constant 0 : index
    %c0_12 = arith.constant 0 : index
    %c0_13 = arith.constant 0 : index
    %13 = vector.load %arg6[%c0_11, %c0_12, %c0_13] : memref<1x17x128xf32, #tpu.memory_space<vmem>>, vector<1x17x128xf32>
    tpu.vector_store %arg6[%c0_11, %c0_12, %c0_13], %12 {strides = array<i32>} : memref<1x17x128xf32, #tpu.memory_space<vmem>>, vector<1x17x128xf32>,
    return
  }
  func.func @transform_0(%arg0: i32) -> (i32, i32, i32) {
    %c0_i32 = arith.constant 0 : i32
    %c0_i32_0 = arith.constant 0 : i32
    %c0_i32_1 = arith.constant 0 : i32
    return %arg0, %c0_i32, %c0_i32_0 : i32, i32, i32
  }
  func.func @transform_1(%arg0: i32) -> (i32, i32) {
    %c0_i32 = arith.constant 0 : i32
    %c0_i32_0 = arith.constant 0 : i32
    %c0_i32_1 = arith.constant 0 : i32
    return %c0_i32, %c0_i32_0 : i32, i32
  }
  func.func @transform_2(%arg0: i32) -> (i32, i32) {
    %c0_i32 = arith.constant 0 : i32
    %c0_i32_0 = arith.constant 0 : i32
    %c0_i32_1 = arith.constant 0 : i32
    return %c0_i32, %c0_i32_0 : i32, i32
  }
  func.func @transform_3(%arg0: i32) -> (i32, i32) {
    %c0_i32 = arith.constant 0 : i32
    %c0_i32_0 = arith.constant 0 : i32
    %c0_i32_1 = arith.constant 0 : i32
    return %c0_i32, %c0_i32_0 : i32, i32
  }
  func.func @transform_4(%arg0: i32) -> (i32, i32, i32) {
    %c0_i32 = arith.constant 0 : i32
    %c0_i32_0 = arith.constant 0 : i32
    %c0_i32_1 = arith.constant 0 : i32
    %c0_i32_2 = arith.constant 0 : i32
    return %c0_i32, %c0_i32_0, %c0_i32_1 : i32, i32, i32
  }
  func.func @transform_5(%arg0: i32) -> (i32, i32, i32) {
    %c0_i32 = arith.constant 0 : i32
    %c0_i32_0 = arith.constant 0 : i32
    %c0_i32_1 = arith.constant 0 : i32
    return %arg0, %c0_i32, %c0_i32_0 : i32, i32, i32
  }
}

</mosaic_0001>

<llo_original>
// kernel: tpu_custom_call.1
$region0: #{tpu_custom_call.1}
  #allocation0 [shape = 'u32[]', space=smem, size = 0x4, offset = 0x4, fixed_abs, tag = 'smem constant byte address 0x4 - core index']
  #allocation1 [shape = 'u32[144,128]{1,0:T(1,128)}', space=vmem, size = 0x12000, scoped, tag = 'internal scratch']
  %s0 = inlined_call_operand.vmem [shape: bf16[2,16,48], index: 0, kind: input, shape index: {}]
  %s1 = inlined_call_operand.vmem [shape: bf16[48,128], index: 1, kind: input, shape index: {}]
  %s2 = inlined_call_operand.vmem [shape: f32[1,128], index: 2, kind: input, shape index: {}]
  %s3 = inlined_call_operand.vmem [shape: f32[1,128], index: 3, kind: input, shape index: {}]
  %s4 = inlined_call_operand.vmem [shape: f32[1,17,128], index: 4, kind: input, shape index: {}]
  %s5 = inlined_call_operand.vmem [shape: f32[2,17,128], index: 5, kind: output, shape index: {}]
  %s6 = sld [smem:[#allocation0]]
  $region53: #{tpu_custom_call.1} parent=0
    _
  %s8 = ssub.s32 1, %s6
  %s9 = scalar_select 0, %s8, %s6
  loop: start=0, step=1, limit=4
  $region2: #{tpu_custom_call.1} parent=0 // loop_pre_header
    _
  $region3: #{tpu_custom_call.1} parent=0 // loop_header
    %s11 = sphi 0, %s15
    %p12 = scmp.ge.s32.totalorder %s11, 4
    %s21 = sphi 0, %s23
    %s24 = sphi 0, %s21
    %s25 = sphi 0, %s24
    %s41 = sphi 0, %s25
    %s45 = sphi 0, %s45
    %s47 = sphi 0, %s45
    %s48 = sphi 0, %s47
    %s62 = sphi 0, %s48
    %s66 = sphi 0, %s66
    %s68 = sphi 0, %s66
    %s69 = sphi 0, %s68
    %s83 = sphi 0, %s69
    %s87 = sphi 0, %s87
    %s89 = sphi 0, %s87
    %s90 = sphi 0, %s89
    %s104 = sphi 0, %s90
    %s108 = sphi 0, %s108
    %s110 = sphi 0, %s108
    %s111 = sphi 0, %s110
    %s125 = sphi 0, %s111
    %s131 = sphi 0, %s133
    %s134 = sphi 0, %s131
    %s135 = sphi 0, %s134
    %s151 = sphi 0, %s135
  $region4: #{tpu_custom_call.1} parent=0 // loop_header_branch
    %14 = sbr.rel (%p12) target = $region8
  $region5: #{tpu_custom_call.1} parent=0 // loop_body
    %s16 = ssub.s32 %s11, 1
    %s17 = ssub.s32 %s11, 2
    %s18 = sadd.s32 %s11, 1
    %s19 = ssub.s32 %s11, %s18
    %p20 = scmp.eq.s32.totalorder %s19, 0
    %s22 = sadd.s32 %s21, 1
    %s23 = scalar_select %p20, %s21, %s22
    %p26 = pneg %p20
    %p27 = scmp.eq.s32.totalorder %s11, 1
    %p28 = por %p26, %p27
    %p29 = scmp.ne.s32.totalorder %s21, %s24
    %p30 = scmp.eq.s32.totalorder %s11, 0
    %p31 = por %p29, %p30
    %p32 = scmp.ne.s32.totalorder %s21, %s24
    %p33 = scmp.eq.s32.totalorder %s16, 1
    %p34 = por %p32, %p33
    %p35 = scmp.ne.s32.totalorder %s24, %s25
    %p36 = scmp.eq.s32.totalorder %s16, 0
    %p37 = por %p35, %p36
    %p38 = scmp.ne.s32.totalorder %s24, %s25
    %p39 = scmp.eq.s32.totalorder %s17, 1
    %p40 = por %p38, %p39
    %p42 = scmp.ne.s32.totalorder %s25, %s41
    %p43 = scmp.eq.s32.totalorder %s17, 0
    %p44 = por %p42, %p43
    %s46 = sadd.s32 %s45, 1
    %p49 = scmp.eq.s32.totalorder %s11, 1
    %p50 = scmp.ne.s32.totalorder %s45, %s47
    %p51 = scmp.eq.s32.totalorder %s11, 0
    %p52 = por %p50, %p51
    %p53 = scmp.ne.s32.totalorder %s45, %s47
    %p54 = scmp.eq.s32.totalorder %s16, 1
    %p55 = por %p53, %p54
    %p56 = scmp.ne.s32.totalorder %s47, %s48
    %p57 = scmp.eq.s32.totalorder %s16, 0
    %p58 = por %p56, %p57
    %p59 = scmp.ne.s32.totalorder %s47, %s48
    %p60 = scmp.eq.s32.totalorder %s17, 1
    %p61 = por %p59, %p60
    %p63 = scmp.ne.s32.totalorder %s48, %s62
    %p64 = scmp.eq.s32.totalorder %s17, 0
    %p65 = por %p63, %p64
    %s67 = sadd.s32 %s66, 1
    %p70 = scmp.eq.s32.totalorder %s11, 1
    %p71 = scmp.ne.s32.totalorder %s66, %s68
    %p72 = scmp.eq.s32.totalorder %s11, 0
    %p73 = por %p71, %p72
    %p74 = scmp.ne.s32.totalorder %s66, %s68
    %p75 = scmp.eq.s32.totalorder %s16, 1
    %p76 = por %p74, %p75
    %p77 = scmp.ne.s32.totalorder %s68, %s69
    %p78 = scmp.eq.s32.totalorder %s16, 0
    %p79 = por %p77, %p78
    %p80 = scmp.ne.s32.totalorder %s68, %s69
    %p81 = scmp.eq.s32.totalorder %s17, 1
    %p82 = por %p80, %p81
    %p84 = scmp.ne.s32.totalorder %s69, %s83
    %p85 = scmp.eq.s32.totalorder %s17, 0
    %p86 = por %p84, %p85
    %s88 = sadd.s32 %s87, 1
    %p91 = scmp.eq.s32.totalorder %s11, 1
    %p92 = scmp.ne.s32.totalorder %s87, %s89
    %p93 = scmp.eq.s32.totalorder %s11, 0
    %p94 = por %p92, %p93
    %p95 = scmp.ne.s32.totalorder %s87, %s89
    %p96 = scmp.eq.s32.totalorder %s16, 1
    %p97 = por %p95, %p96
    %p98 = scmp.ne.s32.totalorder %s89, %s90
    %p99 = scmp.eq.s32.totalorder %s16, 0
    %p100 = por %p98, %p99
    %p101 = scmp.ne.s32.totalorder %s89, %s90
    %p102 = scmp.eq.s32.totalorder %s17, 1
    %p103 = por %p101, %p102
    %p105 = scmp.ne.s32.totalorder %s90, %s104
    %p106 = scmp.eq.s32.totalorder %s17, 0
    %p107 = por %p105, %p106
    %s109 = sadd.s32 %s108, 1
    %p112 = scmp.eq.s32.totalorder %s11, 1
    %p113 = scmp.ne.s32.totalorder %s108, %s110
    %p114 = scmp.eq.s32.totalorder %s11, 0
    %p115 = por %p113, %p114
    %p116 = scmp.ne.s32.totalorder %s108, %s110
    %p117 = scmp.eq.s32.totalorder %s16, 1
    %p118 = por %p116, %p117
    %p119 = scmp.ne.s32.totalorder %s110, %s111
    %p120 = scmp.eq.s32.totalorder %s16, 0
    %p121 = por %p119, %p120
    %p122 = scmp.ne.s32.totalorder %s110, %s111
    %p123 = scmp.eq.s32.totalorder %s17, 1
    %p124 = por %p122, %p123
    %p126 = scmp.ne.s32.totalorder %s111, %s125
    %p127 = scmp.eq.s32.totalorder %s17, 0
    %p128 = por %p126, %p127
    %s129 = ssub.s32 %s11, %s18
    %p130 = scmp.eq.s32.totalorder %s129, 0
    %s132 = sadd.s32 %s131, 1
    %s133 = scalar_select %p130, %s131, %s132
    %p136 = pneg %p130
    %p137 = scmp.eq.s32.totalorder %s11, 1
    %p138 = por %p136, %p137
    %p139 = scmp.ne.s32.totalorder %s131, %s134
    %p140 = scmp.eq.s32.totalorder %s11, 0
    %p141 = por %p139, %p140
    %p142 = scmp.ne.s32.totalorder %s131, %s134
    %p143 = scmp.eq.s32.totalorder %s16, 1
    %p144 = por %p142, %p143
    %p145 = scmp.ne.s32.totalorder %s134, %s135
    %p146 = scmp.eq.s32.totalorder %s16, 0
    %p147 = por %p145, %p146
    %p148 = scmp.ne.s32.totalorder %s134, %s135
    %p149 = scmp.eq.s32.totalorder %s17, 1
    %p150 = por %p148, %p149
    %p152 = scmp.ne.s32.totalorder %s135, %s151
    %p153 = scmp.eq.s32.totalorder %s17, 0
    %p154 = por %p152, %p153
    %p155 = scmp.le.s32.totalorder 1, %s11
    %p156 = scmp.lt.s32.totalorder %s11, 3
    %p157 = pnand %p155, %p156
    %p158 = pneg %p157
    // Predicated region
    $region9: #{tpu_custom_call.1} parent=5 // pred_check
      _
    $region10: #{tpu_custom_call.1} parent=5 // pred_check_branch
      %160 = sbr.rel (%p157) target = $region12
    $region11: #{tpu_custom_call.1} parent=5 // pred_region
      %s161 = ssub.s32 %s11, 1
      // Predicated region
      $region13: #{tpu_custom_call.1} parent=11 // pred_check
        %p162 = pneg %p58
      $region14: #{tpu_custom_call.1} parent=11 // pred_check_branch
        %164 = sbr.rel (%p162) target = $region16
      $region15: #{tpu_custom_call.1} parent=11 // pred_region
        _
      $region16: #{tpu_custom_call.1} parent=11 // pred_fallthru
        _
      // Predicated region
      $region17: #{tpu_custom_call.1} parent=11 // pred_check
        %p165 = pneg %p79
      $region18: #{tpu_custom_call.1} parent=11 // pred_check_branch
        %167 = sbr.rel (%p165) target = $region20
      $region19: #{tpu_custom_call.1} parent=11 // pred_region
        _
      $region20: #{tpu_custom_call.1} parent=11 // pred_fallthru
        _
      // Predicated region
      $region21: #{tpu_custom_call.1} parent=11 // pred_check
        %p168 = pneg %p100
      $region22: #{tpu_custom_call.1} parent=11 // pred_check_branch
        %170 = sbr.rel (%p168) target = $region24
      $region23: #{tpu_custom_call.1} parent=11 // pred_region
        _
      $region24: #{tpu_custom_call.1} parent=11 // pred_fallthru
        _
      // Predicated region
      $region25: #{tpu_custom_call.1} parent=11 // pred_check
        %p171 = pneg %p121
      $region26: #{tpu_custom_call.1} parent=11 // pred_check_branch
        %173 = sbr.rel (%p171) target = $region28
      $region27: #{tpu_custom_call.1} parent=11 // pred_region
        _
      $region28: #{tpu_custom_call.1} parent=11 // pred_fallthru
        _
    $region12: #{tpu_custom_call.1} parent=5 // pred_fallthru
      _
    %p174 = scmp.lt.s32.totalorder %s11, 2
    // Predicated region
    $region29: #{tpu_custom_call.1} parent=5 // pred_check
      %p175 = pneg %p174
    $region30: #{tpu_custom_call.1} parent=5 // pred_check_branch
      %177 = sbr.rel (%p175) target = $region32
    $region31: #{tpu_custom_call.1} parent=5 // pred_region
      // Predicated region
      $region33: #{tpu_custom_call.1} parent=31 // pred_check
        %p178 = pneg %p31
      $region34: #{tpu_custom_call.1} parent=31 // pred_check_branch
        %180 = sbr.rel (%p178) target = $region36
      $region35: #{tpu_custom_call.1} parent=31 // pred_region
        %p181 = scmp.lt.s32.totalorder %s11, 1
        %s182 = scalar_select %p181, %s11, 1
        %s183 = smul.addr %s182, 2
        %s184 = smul.addr %s183, 4
        %s185 = scalar_lea.vmem %s0, %s184
      $region36: #{tpu_custom_call.1} parent=31 // pred_fallthru
        _
    $region32: #{tpu_custom_call.1} parent=5 // pred_fallthru
      _
    %p186 = scmp.le.s32.totalorder 1, %s11
    %p187 = scmp.lt.s32.totalorder %s11, 3
    %p188 = pnand %p186, %p187
    %p189 = pneg %p188
    // Predicated region
    $region37: #{tpu_custom_call.1} parent=5 // pred_check
      _
    $region38: #{tpu_custom_call.1} parent=5 // pred_check_branch
      %191 = sbr.rel (%p188) target = $region40
    $region39: #{tpu_custom_call.1} parent=5 // pred_region
      %s192 = ssub.s32 %s11, 1
      %p193 = scmp.lt.s32.totalorder %s16, 1
      %s194 = scalar_select %p193, %s16, 1
      %s195 = smul.addr %s194, 2
      %s196 = smul.addr %s195, 4
      %s197 = scalar_lea.vmem %s0, %s196
      %p198 = pneg %p37
      %p199 = pneg %p34
      %p200 = pneg %p58
      %p201 = pneg %p55
      %p202 = pneg %p79
      %p203 = pneg %p76
      %p204 = pneg %p100
      %p205 = pneg %p97
      %p206 = pneg %p121
      %p207 = pneg %p118
      %p208 = pneg %p147
      %p209 = pneg %p144
      %p210 = scmp.lt.s32.totalorder %s16, 1
      %s211 = scalar_select %p210, %s16, 1
      %s212 = smul.addr %s211, 3
      %s213 = smul.addr %s212, 8
      %s214 = scalar_lea.vmem %s5, %s213
      %p215 = scmp.lt.s32.totalorder %s16, 1
      %s216 = scalar_select %p215, %s16, 1
      %s217 = smul.addr %s216, 2
      %s218 = smul.addr %s217, 4
      %s219 = scalar_lea.vmem %s0, %s218
      %p220 = scmp.lt.s32.totalorder %s16, 1
      %s221 = scalar_select %p220, %s16, 1
      %s222 = smul.addr %s221, 3
      %s223 = smul.addr %s222, 8
      %s224 = scalar_lea.vmem %s5, %s223
      %v226 = vld [vmem:[%s219] sm:$0xf]
      %v227 = vld [vmem:[%s219 + $0x4] sm:$0xf]
      %v228 = vld [vmem:[%s1] sm:$0xf]
      %v229 = vld [vmem:[%s1 + $0x4] sm:$0xf]
      %v230 = vld [vmem:[%s1 + $0x8] sm:$0xf]
      %v231 = vld [vmem:[%s1 + $0xc] sm:$0xf]
      %v232 = vld [vmem:[%s1 + $0x10] sm:$0xf]
      %v233 = vld [vmem:[%s1 + $0x14] sm:$0xf]
      %v234 = vld [vmem:[%s2] sm:$0x1]
      %v236 = vlaneseq
      %v237 = vshrl.u32 %v236, 7
      %v238 = vsub.s32 0, %v237
      %v239 = vrot.slane %v234, %v238
      %v243 = vunpack.c.l.b16 %v226
      %v244 = vunpack.c.l.b16 %v227
      %v245 = vpack.c.b16 %v244, %v243
      %v252 = vunpack.c.l.b16 %v228
      %v253 = vunpack.c.l.b16 %v229
      %v254 = vunpack.c.l.b16 %v230
      %v255 = vunpack.c.l.b16 %v231
      %v256 = vunpack.c.l.b16 %v232
      %v257 = vunpack.c.l.b16 %v233
      %v258 = vpack.c.b16 %v253, %v252
      %v259 = vpack.c.b16 %v255, %v254
      %v260 = vpack.c.b16 %v257, %v256
      %vm264 = vcmask 392192
      %v266 = vsel %vm264, %v245, 0
      %268 = vmatprep.subr.bf16.mxu0 0
      %269 = vmatpush1.bf16.msra.mxu0 0
      %270 = vmatprep.subr.bf16.mxu0 0
      %271 = vmatpush1.bf16.msra.mxu0 0
      %272 = vmatprep.subr.bf16.mxu0 0
      %273 = vmatpush1.bf16.msra.mxu0 0
      %274 = vmatprep.subr.bf16.mxu0 0
      %275 = vmatpush1.bf16.msra.mxu0 0
      %276 = vmatprep.subr.bf16.mxu0 0
      %277 = vmatpush1.bf16.msra.mxu0 0
      %278 = vmatprep.subr.bf16.mxu0 0
      %279 = vmatpush1.bf16.msra.mxu0 %v260
      %280 = vmatprep.subr.bf16.mxu0 0
      %281 = vmatpush1.bf16.msra.mxu0 %v259
      %282 = vmatprep.subr.bf16.mxu0 0
      %283 = vmatpush1.bf16.msra.mxu0 %v258
      %284 = vmatprep.subr.bf16.mxu0 0
      %285 = vmatpush2.bf16.msra.mxu0 0
      %286 = vmatprep.subr.bf16.mxu0 0
      %287 = vmatpush2.bf16.msra.mxu0 0
      %288 = vmatprep.subr.bf16.mxu0 0
      %289 = vmatpush2.bf16.msra.mxu0 0
      %290 = vmatprep.subr.bf16.mxu0 0
      %291 = vmatpush2.bf16.msra.mxu0 0
      %292 = vmatprep.subr.bf16.mxu0 0
      %293 = vmatpush2.bf16.msra.mxu0 0
      %294 = vmatprep.subr.bf16.mxu0 0
      %295 = vmatpush2.bf16.msra.mxu0 0
      %296 = vmatprep.subr.bf16.mxu0 0
      %297 = vmatpush2.bf16.msra.mxu0 0
      %298 = vmatprep.subr.bf16.mxu0 0
      %299 = vmatpush2.bf16.msra.mxu0 0
      %300 = vmatprep.mubr.bf16.mxu0 0
      %301 = vmatmul.mubr.bf16.gmra.mxu0 %v266
      %v302 = vpop.f32.mrf.mxu0
      %v303 = vadd.f32 %v239, %v302
      %v304 = vpop.f32.mrf.mxu0
      %v305 = vpop.f32.mrf.mxu0
      %v306 = vadd.f32 %v239, %v305
      %v307 = vpop.f32.mrf.mxu0
      %308 = vdwg.mxu0
      %v309 = vld [vmem:[%s3] sm:$0x1]
      %vm312 = vcmask 1040384
      %v313 = vrot.slane %v303, 7
      %v314 = vrot.slane %v306, 7
      %v315 = vsel %vm312, %v313, %v314
      %v319 = vsel %vm312, %v309, %v313
      %v320 = vld [vmem:[%s4] sm:$0xff]
      %v321 = vld [vmem:[%s4 + $0x8] sm:$0xff]
      %v322 = vld [vmem:[%s4 + $0x10] sm:$0x1]
      %v323 = vadd.f32 %v319, %v320
      %v324 = vadd.f32 %v315, %v321
      %v325 = vadd.f32 %v314, %v322
      %326 = vst [vmem:[%s224] sm:$0xff] %v323
      %327 = vst [vmem:[%s224 + $0x8] sm:$0xff] %v324
      %328 = vst [vmem:[%s224 + $0x10] sm:$0x1] %v325
      %p329 = scmp.lt.s32.totalorder %s16, 1
      %s330 = scalar_select %p329, %s16, 1
      %s331 = smul.addr %s330, 3
      %s332 = smul.addr %s331, 8
      %s333 = scalar_lea.vmem %s5, %s332
      // Predicated region
      $region41: #{tpu_custom_call.1} parent=39 // pred_check
        %p334 = pneg %p144
      $region42: #{tpu_custom_call.1} parent=39 // pred_check_branch
        %336 = sbr.rel (%p334) target = $region44
      $region43: #{tpu_custom_call.1} parent=39 // pred_region
        _
      $region44: #{tpu_custom_call.1} parent=39 // pred_fallthru
        _
    $region40: #{tpu_custom_call.1} parent=5 // pred_fallthru
      _
    %p337 = scmp.le.s32.totalorder 2, %s11
    // Predicated region
    $region45: #{tpu_custom_call.1} parent=5 // pred_check
      %p338 = pneg %p337
    $region46: #{tpu_custom_call.1} parent=5 // pred_check_branch
      %340 = sbr.rel (%p338) target = $region48
    $region47: #{tpu_custom_call.1} parent=5 // pred_region
      %s341 = ssub.s32 %s11, 2
      // Predicated region
      $region49: #{tpu_custom_call.1} parent=47 // pred_check
        %p342 = pneg %p150
      $region50: #{tpu_custom_call.1} parent=47 // pred_check_branch
        %344 = sbr.rel (%p342) target = $region52
      $region51: #{tpu_custom_call.1} parent=47 // pred_region
        %p345 = scmp.lt.s32.totalorder %s17, 1
        %s346 = scalar_select %p345, %s17, 1
        %s347 = smul.addr %s346, 3
        %s348 = smul.addr %s347, 8
        %s349 = scalar_lea.vmem %s5, %s348
      $region52: #{tpu_custom_call.1} parent=47 // pred_fallthru
        _
    $region48: #{tpu_custom_call.1} parent=5 // pred_fallthru
      _
  $region6: #{tpu_custom_call.1} parent=0 // loop_footer
    %s15 = sadd.s32 1, %s11
  $region7: #{tpu_custom_call.1} parent=0 // loop_footer_branch
    %10 = sbr.rel target = $region3
  $region8: #{tpu_custom_call.1} parent=0 // loop_exit
    _

</llo_original>
